<compile_context>
chip_gen: v5e
topology: v5e:2x2
jax: 0.10.0
libtpu: 0.0.40
codegen_flags: <defaults>
</compile_context>

<pallas_src>
import functools

import jax
import jax.numpy as jnp
from jax.experimental import pallas as pl
from jax.experimental.pallas import tpu as pltpu


def _lstm_recurrence_kernel(gx_ref, whh_ref, out_ref, h_scr, c_scr):
    """Sequential LSTM recurrence over one time tile.

    gx_ref : (B, T_tile, 4*H_out)  precomputed x-projection + bias, gate order (i, f, o, g)
    whh_ref: (H_out, 4*H_out)      recurrent weights (transposed, same gate order)
    out_ref: (B, T_tile, H_out)    h_t for every step in this tile
    h_scr, c_scr: (B, H_out) f32   recurrent state, persistent across grid steps
    """
    # Zero-init the recurrent state only on the first time tile.
    @pl.when(pl.program_id(0) == 0)
    def _():
        h_scr[...] = jnp.zeros_like(h_scr)
        c_scr[...] = jnp.zeros_like(c_scr)

    t_tile = gx_ref.shape[1]
    h_out = h_scr.shape[1]

    whh = whh_ref[...]          # hoisted: loaded once per tile
    h = h_scr[...]
    c = c_scr[...]

    # Fully unrolled static loop over the (small) time tile.
    for t in range(t_tile):
        gates = gx_ref[:, t, :] + jnp.dot(h, whh, preferred_element_type=jnp.float32)
        sig = jax.nn.sigmoid(gates[:, : 3 * h_out])   # i, f, o in one contiguous slice
        g_gate = jnp.tanh(gates[:, 3 * h_out:])       # g
        i_g = sig[:, :h_out]
        f_g = sig[:, h_out: 2 * h_out]
        o_g = sig[:, 2 * h_out: 3 * h_out]
        c = f_g * c + i_g * g_gate
        h = o_g * jnp.tanh(c)
        out_ref[:, t, :] = h.astype(out_ref.dtype)

    # Persist state for the next time tile.
    h_scr[...] = h
    c_scr[...] = c


@functools.partial(jax.jit, static_argnames=("t_tile",))
def decoder_forward(x, w_ih, w_hh, b_ih, b_hh, *, t_tile=8):
    """x: (B, T, H_in) float32; LSTM weights in PyTorch layout. Returns (B, T, H_out)."""
    B, T, H_in = x.shape
    H_out = w_hh.shape[1]          # w_hh: (4*H_out, H_out)
    H4 = 4 * H_out

    # Reorder gates (i, f, g, o) -> (i, f, o, g) so sigmoid/tanh each act on one slice.
    perm = jnp.concatenate([
        jnp.arange(0 * H_out, 1 * H_out),   # i
        jnp.arange(1 * H_out, 2 * H_out),   # f
        jnp.arange(3 * H_out, 4 * H_out),   # o
        jnp.arange(2 * H_out, 3 * H_out),   # g
    ])
    w_ih_r = w_ih[perm].astype(jnp.float32)                 # (4H, H_in)
    w_hh_r = w_hh[perm].astype(jnp.float32)                 # (4H, H_out)
    bias_r = (b_ih + b_hh)[perm].astype(jnp.float32)        # (4H,)

    wih_t = w_ih_r.T                                        # (H_in, 4H)
    whh_t = w_hh_r.T                                        # (H_out, 4H)

    # Hoisted input projection + bias: one big MXU-friendly matmul over all timesteps.
    gates_x = (
        jnp.dot(x.reshape(B * T, H_in).astype(jnp.float32), wih_t,
                preferred_element_type=jnp.float32).reshape(B, T, H4)
        + bias_r[None, None, :]
    )

    # Time tiling (pad T up to a multiple of t_tile; padded steps are sliced off afterwards
    # and cannot affect earlier outputs since the recurrence runs forward in time).
    tt = min(t_tile, T)
    T_pad = pl.cdiv(T, tt) * tt
    if T_pad != T:
        gates_x = jnp.pad(gates_x, ((0, 0), (0, T_pad - T), (0, 0)))

    out = pl.pallas_call(
        _lstm_recurrence_kernel,
        out_shape=jax.ShapeDtypeStruct((B, T_pad, H_out), jnp.float32),
        grid=(T_pad // tt,),
        in_specs=[
            pl.BlockSpec((B, tt, H4), lambda i: (0, i, 0)),       # time-tiled gates_x
            pl.BlockSpec((H_out, H4), lambda i: (0, 0)),          # resident W_hh.T
        ],
        out_specs=pl.BlockSpec((B, tt, H_out), lambda i: (0, i, 0)),
        scratch_shapes=[
            pltpu.VMEM((B, H_out), jnp.float32),   # h
            pltpu.VMEM((B, H_out), jnp.float32),   # c
        ],
        compiler_params=pltpu.CompilerParams(
            dimension_semantics=("arbitrary",),     # sequential: state carried across tiles
        ),
    )(gates_x, whh_t)

    if T_pad != T:
        out = out[:, :T, :]
    return out


def _reference_lstm(x, w_ih, w_hh, b_ih, b_hh):
    """Pure-JAX reference matching torch.nn.LSTM(batch_first=True) semantics."""
    B, T, _ = x.shape
    H_out = w_hh.shape[1]
    h = jnp.zeros((B, H_out), jnp.float32)
    c = jnp.zeros((B, H_out), jnp.float32)
    outs = []
    for t in range(T):
        gates = x[:, t, :] @ w_ih.T + h @ w_hh.T + b_ih + b_hh
        i = jax.nn.sigmoid(gates[:, 0 * H_out:1 * H_out])
        f = jax.nn.sigmoid(gates[:, 1 * H_out:2 * H_out])
        g = jnp.tanh(gates[:, 2 * H_out:3 * H_out])
        o = jax.nn.sigmoid(gates[:, 3 * H_out:4 * H_out])
        c = f * c + i * g
        h = o * jnp.tanh(c)
        outs.append(h)
    return jnp.stack(outs, axis=1)


if __name__ == "__main__":
    hidden_size = 64    # matches the module's global
    output_size = 32
    batch = 2
    seq = 16            # > t_tile so the time grid (and cross-tile state carry) is exercised

    key = jax.random.PRNGKey(0)
    k_x, k_wih, k_whh, k_bih, k_bhh = jax.random.split(key, 5)

    # Deterministic parameter init, same shapes / bounds as torch.nn.LSTM default.
    bound = 1.0 / (output_size ** 0.5)
    w_ih = jax.random.uniform(k_wih, (4 * output_size, hidden_size),
                              jnp.float32, -bound, bound)
    w_hh = jax.random.uniform(k_whh, (4 * output_size, output_size),
                              jnp.float32, -bound, bound)
    b_ih = jax.random.uniform(k_bih, (4 * output_size,), jnp.float32, -bound, bound)
    b_hh = jax.random.uniform(k_bhh, (4 * output_size,), jnp.float32, -bound, bound)

    x = jax.random.normal(k_x, (batch, seq, hidden_size), jnp.float32)

    out = decoder_forward(x, w_ih, w_hh, b_ih, b_hh, t_tile=8)
    out = jax.block_until_ready(out)

    ref = _reference_lstm(x, w_ih, w_hh, b_ih, b_hh)
    assert out.shape == (batch, seq, output_size)
    assert jnp.allclose(out, ref, atol=1e-5, rtol=1e-5), "mismatch vs reference"

    print("KERNEL_OK")
</pallas_src>

<mosaic_0001>
module attributes {stable_mosaic.version = 11 : i64} {
  func.func @_lstm_recurrence_kernel(%arg0: i32, %arg1: memref<2x8x128xf32, #tpu.memory_space<vmem>>, %arg2: memref<32x128xf32, #tpu.memory_space<vmem>>, %arg3: memref<2x8x32xf32, #tpu.memory_space<vmem>>, %arg4: memref<2x32xf32, #tpu.memory_space<vmem>>, %arg5: memref<2x32xf32, #tpu.memory_space<vmem>>) attributes {dimension_semantics = [#tpu.dimension_semantics<arbitrary>], iteration_bounds = array<i64: 2>, scalar_prefetch = 0 : i64, scratch_operands = 2 : i64, tpu.core_type = #tpu.core_type<tc>, window_params = [{transform_indices = @transform_0, window_bounds = array<i64: 2, 8, 128>}, {pipeline_mode = #tpu.pipeline_mode<synchronous>, transform_indices = @transform_1, window_bounds = array<i64: 32, 128>}, {transform_indices = @transform_2, window_bounds = array<i64: 2, 8, 32>}]} {
    %c0_i32 = arith.constant 0 : i32
    %0 = arith.cmpi eq, %arg0, %c0_i32 : i32
    %1 = arith.extui %0 : i1 to i32
    %c0_i32_0 = arith.constant 0 : i32
    %2 = arith.cmpi ne, %1, %c0_i32_0 : i32
    scf.if %2 {
      %cst_66 = arith.constant 0.000000e+00 : f32
      %192 = vector.broadcast %cst_66 : f32 to vector<2x32xf32>
      %c0_67 = arith.constant 0 : index
      %c0_68 = arith.constant 0 : index
      %193 = vector.load %arg4[%c0_67, %c0_68] : memref<2x32xf32, #tpu.memory_space<vmem>>, vector<2x32xf32>
      tpu.vector_store %arg4[%c0_67, %c0_68], %192 {strides = array<i32>} : memref<2x32xf32, #tpu.memory_space<vmem>>, vector<2x32xf32>,
      %cst_69 = arith.constant 0.000000e+00 : f32
      %194 = vector.broadcast %cst_69 : f32 to vector<2x32xf32>
      %c0_70 = arith.constant 0 : index
      %c0_71 = arith.constant 0 : index
      %195 = vector.load %arg5[%c0_70, %c0_71] : memref<2x32xf32, #tpu.memory_space<vmem>>, vector<2x32xf32>
      tpu.vector_store %arg5[%c0_70, %c0_71], %194 {strides = array<i32>} : memref<2x32xf32, #tpu.memory_space<vmem>>, vector<2x32xf32>,
    } else {
    }
    %c0 = arith.constant 0 : index
    %c0_1 = arith.constant 0 : index
    %3 = vector.load %arg2[%c0, %c0_1] : memref<32x128xf32, #tpu.memory_space<vmem>>, vector<32x128xf32>
    %c0_2 = arith.constant 0 : index
    %c0_3 = arith.constant 0 : index
    %4 = vector.load %arg4[%c0_2, %c0_3] : memref<2x32xf32, #tpu.memory_space<vmem>>, vector<2x32xf32>
    %c0_4 = arith.constant 0 : index
    %c0_5 = arith.constant 0 : index
    %5 = vector.load %arg5[%c0_4, %c0_5] : memref<2x32xf32, #tpu.memory_space<vmem>>, vector<2x32xf32>
    %c0_6 = arith.constant 0 : index
    %c0_7 = arith.constant 0 : index
    %c0_8 = arith.constant 0 : index
    %6 = vector.load %arg1[%c0_6, %c0_7, %c0_8] : memref<2x8x128xf32, #tpu.memory_space<vmem>>, vector<2x1x128xf32>
    %7 = vector.shape_cast %6 : vector<2x1x128xf32> to vector<2x128xf32>
    %cst = arith.constant dense<0.000000e+00> : vector<2x128xf32>
    %8 = tpu.matmul %4, %3, %cst {dimension_numbers = #tpu.dot_dimension_numbers<[1], [0], [0], [1], [0, 0, 1, 1], [], []>} : vector<2x32xf32>, vector<32x128xf32>, vector<2x128xf32> -> vector<2x128xf32>
    %9 = arith.addf %7, %8 : vector<2x128xf32>
    %10 = vector.extract_strided_slice %9 {offsets = [0, 0], sizes = [2, 96], strides = [1, 1]} : vector<2x128xf32> to vector<2x96xf32>
    %11 = arith.negf %10 : vector<2x96xf32>
    %12 = math.exp %11 : vector<2x96xf32>
    %cst_9 = arith.constant 1.000000e+00 : f32
    %13 = vector.broadcast %cst_9 : f32 to vector<2x96xf32>
    %14 = arith.addf %13, %12 : vector<2x96xf32>
    %15 = arith.divf %13, %14 : vector<2x96xf32>
    %16 = vector.extract_strided_slice %9 {offsets = [0, 96], sizes = [2, 32], strides = [1, 1]} : vector<2x128xf32> to vector<2x32xf32>
    %17 = math.tanh %16 : vector<2x32xf32>
    %18 = vector.extract_strided_slice %15 {offsets = [0, 0], sizes = [2, 32], strides = [1, 1]} : vector<2x96xf32> to vector<2x32xf32>
    %19 = vector.extract_strided_slice %15 {offsets = [0, 32], sizes = [2, 32], strides = [1, 1]} : vector<2x96xf32> to vector<2x32xf32>
    %20 = vector.extract_strided_slice %15 {offsets = [0, 64], sizes = [2, 32], strides = [1, 1]} : vector<2x96xf32> to vector<2x32xf32>
    %21 = arith.mulf %19, %5 : vector<2x32xf32>
    %22 = arith.mulf %18, %17 : vector<2x32xf32>
    %23 = arith.addf %21, %22 : vector<2x32xf32>
    %24 = math.tanh %23 : vector<2x32xf32>
    %25 = arith.mulf %20, %24 : vector<2x32xf32>
    %c0_10 = arith.constant 0 : index
    %c0_11 = arith.constant 0 : index
    %c0_12 = arith.constant 0 : index
    %26 = vector.load %arg3[%c0_10, %c0_11, %c0_12] : memref<2x8x32xf32, #tpu.memory_space<vmem>>, vector<2x1x32xf32>
    %27 = vector.shape_cast %26 : vector<2x1x32xf32> to vector<2x32xf32>
    %28 = vector.shape_cast %25 : vector<2x32xf32> to vector<2x1x32xf32>
    tpu.vector_store %arg3[%c0_10, %c0_11, %c0_12], %28 {strides = array<i32>} : memref<2x8x32xf32, #tpu.memory_space<vmem>>, vector<2x1x32xf32>,
    %c0_13 = arith.constant 0 : index
    %c1 = arith.constant 1 : index
    %c0_14 = arith.constant 0 : index
    %29 = vector.load %arg1[%c0_13, %c1, %c0_14] : memref<2x8x128xf32, #tpu.memory_space<vmem>>, vector<2x1x128xf32>
    %30 = vector.shape_cast %29 : vector<2x1x128xf32> to vector<2x128xf32>
    %cst_15 = arith.constant dense<0.000000e+00> : vector<2x128xf32>
    %31 = tpu.matmul %25, %3, %cst_15 {dimension_numbers = #tpu.dot_dimension_numbers<[1], [0], [0], [1], [0, 0, 1, 1], [], []>} : vector<2x32xf32>, vector<32x128xf32>, vector<2x128xf32> -> vector<2x128xf32>
    %32 = arith.addf %30, %31 : vector<2x128xf32>
    %33 = vector.extract_strided_slice %32 {offsets = [0, 0], sizes = [2, 96], strides = [1, 1]} : vector<2x128xf32> to vector<2x96xf32>
    %34 = arith.negf %33 : vector<2x96xf32>
    %35 = math.exp %34 : vector<2x96xf32>
    %cst_16 = arith.constant 1.000000e+00 : f32
    %36 = vector.broadcast %cst_16 : f32 to vector<2x96xf32>
    %37 = arith.addf %36, %35 : vector<2x96xf32>
    %38 = arith.divf %36, %37 : vector<2x96xf32>
    %39 = vector.extract_strided_slice %32 {offsets = [0, 96], sizes = [2, 32], strides = [1, 1]} : vector<2x128xf32> to vector<2x32xf32>
    %40 = math.tanh %39 : vector<2x32xf32>
    %41 = vector.extract_strided_slice %38 {offsets = [0, 0], sizes = [2, 32], strides = [1, 1]} : vector<2x96xf32> to vector<2x32xf32>
    %42 = vector.extract_strided_slice %38 {offsets = [0, 32], sizes = [2, 32], strides = [1, 1]} : vector<2x96xf32> to vector<2x32xf32>
    %43 = vector.extract_strided_slice %38 {offsets = [0, 64], sizes = [2, 32], strides = [1, 1]} : vector<2x96xf32> to vector<2x32xf32>
    %44 = arith.mulf %42, %23 : vector<2x32xf32>
    %45 = arith.mulf %41, %40 : vector<2x32xf32>
    %46 = arith.addf %44, %45 : vector<2x32xf32>
    %47 = math.tanh %46 : vector<2x32xf32>
    %48 = arith.mulf %43, %47 : vector<2x32xf32>
    %c0_17 = arith.constant 0 : index
    %c1_18 = arith.constant 1 : index
    %c0_19 = arith.constant 0 : index
    %49 = vector.load %arg3[%c0_17, %c1_18, %c0_19] : memref<2x8x32xf32, #tpu.memory_space<vmem>>, vector<2x1x32xf32>
    %50 = vector.shape_cast %49 : vector<2x1x32xf32> to vector<2x32xf32>
    %51 = vector.shape_cast %48 : vector<2x32xf32> to vector<2x1x32xf32>
    tpu.vector_store %arg3[%c0_17, %c1_18, %c0_19], %51 {strides = array<i32>} : memref<2x8x32xf32, #tpu.memory_space<vmem>>, vector<2x1x32xf32>,
    %c0_20 = arith.constant 0 : index
    %c2 = arith.constant 2 : index
    %c0_21 = arith.constant 0 : index
    %52 = vector.load %arg1[%c0_20, %c2, %c0_21] : memref<2x8x128xf32, #tpu.memory_space<vmem>>, vector<2x1x128xf32>
    %53 = vector.shape_cast %52 : vector<2x1x128xf32> to vector<2x128xf32>
    %cst_22 = arith.constant dense<0.000000e+00> : vector<2x128xf32>
    %54 = tpu.matmul %48, %3, %cst_22 {dimension_numbers = #tpu.dot_dimension_numbers<[1], [0], [0], [1], [0, 0, 1, 1], [], []>} : vector<2x32xf32>, vector<32x128xf32>, vector<2x128xf32> -> vector<2x128xf32>
    %55 = arith.addf %53, %54 : vector<2x128xf32>
    %56 = vector.extract_strided_slice %55 {offsets = [0, 0], sizes = [2, 96], strides = [1, 1]} : vector<2x128xf32> to vector<2x96xf32>
    %57 = arith.negf %56 : vector<2x96xf32>
    %58 = math.exp %57 : vector<2x96xf32>
    %cst_23 = arith.constant 1.000000e+00 : f32
    %59 = vector.broadcast %cst_23 : f32 to vector<2x96xf32>
    %60 = arith.addf %59, %58 : vector<2x96xf32>
    %61 = arith.divf %59, %60 : vector<2x96xf32>
    %62 = vector.extract_strided_slice %55 {offsets = [0, 96], sizes = [2, 32], strides = [1, 1]} : vector<2x128xf32> to vector<2x32xf32>
    %63 = math.tanh %62 : vector<2x32xf32>
    %64 = vector.extract_strided_slice %61 {offsets = [0, 0], sizes = [2, 32], strides = [1, 1]} : vector<2x96xf32> to vector<2x32xf32>
    %65 = vector.extract_strided_slice %61 {offsets = [0, 32], sizes = [2, 32], strides = [1, 1]} : vector<2x96xf32> to vector<2x32xf32>
    %66 = vector.extract_strided_slice %61 {offsets = [0, 64], sizes = [2, 32], strides = [1, 1]} : vector<2x96xf32> to vector<2x32xf32>
    %67 = arith.mulf %65, %46 : vector<2x32xf32>
    %68 = arith.mulf %64, %63 : vector<2x32xf32>
    %69 = arith.addf %67, %68 : vector<2x32xf32>
    %70 = math.tanh %69 : vector<2x32xf32>
    %71 = arith.mulf %66, %70 : vector<2x32xf32>
    %c0_24 = arith.constant 0 : index
    %c2_25 = arith.constant 2 : index
    %c0_26 = arith.constant 0 : index
    %72 = vector.load %arg3[%c0_24, %c2_25, %c0_26] : memref<2x8x32xf32, #tpu.memory_space<vmem>>, vector<2x1x32xf32>
    %73 = vector.shape_cast %72 : vector<2x1x32xf32> to vector<2x32xf32>
    %74 = vector.shape_cast %71 : vector<2x32xf32> to vector<2x1x32xf32>
    tpu.vector_store %arg3[%c0_24, %c2_25, %c0_26], %74 {strides = array<i32>} : memref<2x8x32xf32, #tpu.memory_space<vmem>>, vector<2x1x32xf32>,
    %c0_27 = arith.constant 0 : index
    %c3 = arith.constant 3 : index
    %c0_28 = arith.constant 0 : index
    %75 = vector.load %arg1[%c0_27, %c3, %c0_28] : memref<2x8x128xf32, #tpu.memory_space<vmem>>, vector<2x1x128xf32>
    %76 = vector.shape_cast %75 : vector<2x1x128xf32> to vector<2x128xf32>
    %cst_29 = arith.constant dense<0.000000e+00> : vector<2x128xf32>
    %77 = tpu.matmul %71, %3, %cst_29 {dimension_numbers = #tpu.dot_dimension_numbers<[1], [0], [0], [1], [0, 0, 1, 1], [], []>} : vector<2x32xf32>, vector<32x128xf32>, vector<2x128xf32> -> vector<2x128xf32>
    %78 = arith.addf %76, %77 : vector<2x128xf32>
    %79 = vector.extract_strided_slice %78 {offsets = [0, 0], sizes = [2, 96], strides = [1, 1]} : vector<2x128xf32> to vector<2x96xf32>
    %80 = arith.negf %79 : vector<2x96xf32>
    %81 = math.exp %80 : vector<2x96xf32>
    %cst_30 = arith.constant 1.000000e+00 : f32
    %82 = vector.broadcast %cst_30 : f32 to vector<2x96xf32>
    %83 = arith.addf %82, %81 : vector<2x96xf32>
    %84 = arith.divf %82, %83 : vector<2x96xf32>
    %85 = vector.extract_strided_slice %78 {offsets = [0, 96], sizes = [2, 32], strides = [1, 1]} : vector<2x128xf32> to vector<2x32xf32>
    %86 = math.tanh %85 : vector<2x32xf32>
    %87 = vector.extract_strided_slice %84 {offsets = [0, 0], sizes = [2, 32], strides = [1, 1]} : vector<2x96xf32> to vector<2x32xf32>
    %88 = vector.extract_strided_slice %84 {offsets = [0, 32], sizes = [2, 32], strides = [1, 1]} : vector<2x96xf32> to vector<2x32xf32>
    %89 = vector.extract_strided_slice %84 {offsets = [0, 64], sizes = [2, 32], strides = [1, 1]} : vector<2x96xf32> to vector<2x32xf32>
    %90 = arith.mulf %88, %69 : vector<2x32xf32>
    %91 = arith.mulf %87, %86 : vector<2x32xf32>
    %92 = arith.addf %90, %91 : vector<2x32xf32>
    %93 = math.tanh %92 : vector<2x32xf32>
    %94 = arith.mulf %89, %93 : vector<2x32xf32>
    %c0_31 = arith.constant 0 : index
    %c3_32 = arith.constant 3 : index
    %c0_33 = arith.constant 0 : index
    %95 = vector.load %arg3[%c0_31, %c3_32, %c0_33] : memref<2x8x32xf32, #tpu.memory_space<vmem>>, vector<2x1x32xf32>
    %96 = vector.shape_cast %95 : vector<2x1x32xf32> to vector<2x32xf32>
    %97 = vector.shape_cast %94 : vector<2x32xf32> to vector<2x1x32xf32>
    tpu.vector_store %arg3[%c0_31, %c3_32, %c0_33], %97 {strides = array<i32>} : memref<2x8x32xf32, #tpu.memory_space<vmem>>, vector<2x1x32xf32>,
    %c0_34 = arith.constant 0 : index
    %c4 = arith.constant 4 : index
    %c0_35 = arith.constant 0 : index
    %98 = vector.load %arg1[%c0_34, %c4, %c0_35] : memref<2x8x128xf32, #tpu.memory_space<vmem>>, vector<2x1x128xf32>
    %99 = vector.shape_cast %98 : vector<2x1x128xf32> to vector<2x128xf32>
    %cst_36 = arith.constant dense<0.000000e+00> : vector<2x128xf32>
    %100 = tpu.matmul %94, %3, %cst_36 {dimension_numbers = #tpu.dot_dimension_numbers<[1], [0], [0], [1], [0, 0, 1, 1], [], []>} : vector<2x32xf32>, vector<32x128xf32>, vector<2x128xf32> -> vector<2x128xf32>
    %101 = arith.addf %99, %100 : vector<2x128xf32>
    %102 = vector.extract_strided_slice %101 {offsets = [0, 0], sizes = [2, 96], strides = [1, 1]} : vector<2x128xf32> to vector<2x96xf32>
    %103 = arith.negf %102 : vector<2x96xf32>
    %104 = math.exp %103 : vector<2x96xf32>
    %cst_37 = arith.constant 1.000000e+00 : f32
    %105 = vector.broadcast %cst_37 : f32 to vector<2x96xf32>
    %106 = arith.addf %105, %104 : vector<2x96xf32>
    %107 = arith.divf %105, %106 : vector<2x96xf32>
    %108 = vector.extract_strided_slice %101 {offsets = [0, 96], sizes = [2, 32], strides = [1, 1]} : vector<2x128xf32> to vector<2x32xf32>
    %109 = math.tanh %108 : vector<2x32xf32>
    %110 = vector.extract_strided_slice %107 {offsets = [0, 0], sizes = [2, 32], strides = [1, 1]} : vector<2x96xf32> to vector<2x32xf32>
    %111 = vector.extract_strided_slice %107 {offsets = [0, 32], sizes = [2, 32], strides = [1, 1]} : vector<2x96xf32> to vector<2x32xf32>
    %112 = vector.extract_strided_slice %107 {offsets = [0, 64], sizes = [2, 32], strides = [1, 1]} : vector<2x96xf32> to vector<2x32xf32>
    %113 = arith.mulf %111, %92 : vector<2x32xf32>
    %114 = arith.mulf %110, %109 : vector<2x32xf32>
    %115 = arith.addf %113, %114 : vector<2x32xf32>
    %116 = math.tanh %115 : vector<2x32xf32>
    %117 = arith.mulf %112, %116 : vector<2x32xf32>
    %c0_38 = arith.constant 0 : index
    %c4_39 = arith.constant 4 : index
    %c0_40 = arith.constant 0 : index
    %118 = vector.load %arg3[%c0_38, %c4_39, %c0_40] : memref<2x8x32xf32, #tpu.memory_space<vmem>>, vector<2x1x32xf32>
    %119 = vector.shape_cast %118 : vector<2x1x32xf32> to vector<2x32xf32>
    %120 = vector.shape_cast %117 : vector<2x32xf32> to vector<2x1x32xf32>
    tpu.vector_store %arg3[%c0_38, %c4_39, %c0_40], %120 {strides = array<i32>} : memref<2x8x32xf32, #tpu.memory_space<vmem>>, vector<2x1x32xf32>,
    %c0_41 = arith.constant 0 : index
    %c5 = arith.constant 5 : index
    %c0_42 = arith.constant 0 : index
    %121 = vector.load %arg1[%c0_41, %c5, %c0_42] : memref<2x8x128xf32, #tpu.memory_space<vmem>>, vector<2x1x128xf32>
    %122 = vector.shape_cast %121 : vector<2x1x128xf32> to vector<2x128xf32>
    %cst_43 = arith.constant dense<0.000000e+00> : vector<2x128xf32>
    %123 = tpu.matmul %117, %3, %cst_43 {dimension_numbers = #tpu.dot_dimension_numbers<[1], [0], [0], [1], [0, 0, 1, 1], [], []>} : vector<2x32xf32>, vector<32x128xf32>, vector<2x128xf32> -> vector<2x128xf32>
    %124 = arith.addf %122, %123 : vector<2x128xf32>
    %125 = vector.extract_strided_slice %124 {offsets = [0, 0], sizes = [2, 96], strides = [1, 1]} : vector<2x128xf32> to vector<2x96xf32>
    %126 = arith.negf %125 : vector<2x96xf32>
    %127 = math.exp %126 : vector<2x96xf32>
    %cst_44 = arith.constant 1.000000e+00 : f32
    %128 = vector.broadcast %cst_44 : f32 to vector<2x96xf32>
    %129 = arith.addf %128, %127 : vector<2x96xf32>
    %130 = arith.divf %128, %129 : vector<2x96xf32>
    %131 = vector.extract_strided_slice %124 {offsets = [0, 96], sizes = [2, 32], strides = [1, 1]} : vector<2x128xf32> to vector<2x32xf32>
    %132 = math.tanh %131 : vector<2x32xf32>
    %133 = vector.extract_strided_slice %130 {offsets = [0, 0], sizes = [2, 32], strides = [1, 1]} : vector<2x96xf32> to vector<2x32xf32>
    %134 = vector.extract_strided_slice %130 {offsets = [0, 32], sizes = [2, 32], strides = [1, 1]} : vector<2x96xf32> to vector<2x32xf32>
    %135 = vector.extract_strided_slice %130 {offsets = [0, 64], sizes = [2, 32], strides = [1, 1]} : vector<2x96xf32> to vector<2x32xf32>
    %136 = arith.mulf %134, %115 : vector<2x32xf32>
    %137 = arith.mulf %133, %132 : vector<2x32xf32>
    %138 = arith.addf %136, %137 : vector<2x32xf32>
    %139 = math.tanh %138 : vector<2x32xf32>
    %140 = arith.mulf %135, %139 : vector<2x32xf32>
    %c0_45 = arith.constant 0 : index
    %c5_46 = arith.constant 5 : index
    %c0_47 = arith.constant 0 : index
    %141 = vector.load %arg3[%c0_45, %c5_46, %c0_47] : memref<2x8x32xf32, #tpu.memory_space<vmem>>, vector<2x1x32xf32>
    %142 = vector.shape_cast %141 : vector<2x1x32xf32> to vector<2x32xf32>
    %143 = vector.shape_cast %140 : vector<2x32xf32> to vector<2x1x32xf32>
    tpu.vector_store %arg3[%c0_45, %c5_46, %c0_47], %143 {strides = array<i32>} : memref<2x8x32xf32, #tpu.memory_space<vmem>>, vector<2x1x32xf32>,
    %c0_48 = arith.constant 0 : index
    %c6 = arith.constant 6 : index
    %c0_49 = arith.constant 0 : index
    %144 = vector.load %arg1[%c0_48, %c6, %c0_49] : memref<2x8x128xf32, #tpu.memory_space<vmem>>, vector<2x1x128xf32>
    %145 = vector.shape_cast %144 : vector<2x1x128xf32> to vector<2x128xf32>
    %cst_50 = arith.constant dense<0.000000e+00> : vector<2x128xf32>
    %146 = tpu.matmul %140, %3, %cst_50 {dimension_numbers = #tpu.dot_dimension_numbers<[1], [0], [0], [1], [0, 0, 1, 1], [], []>} : vector<2x32xf32>, vector<32x128xf32>, vector<2x128xf32> -> vector<2x128xf32>
    %147 = arith.addf %145, %146 : vector<2x128xf32>
    %148 = vector.extract_strided_slice %147 {offsets = [0, 0], sizes = [2, 96], strides = [1, 1]} : vector<2x128xf32> to vector<2x96xf32>
    %149 = arith.negf %148 : vector<2x96xf32>
    %150 = math.exp %149 : vector<2x96xf32>
    %cst_51 = arith.constant 1.000000e+00 : f32
    %151 = vector.broadcast %cst_51 : f32 to vector<2x96xf32>
    %152 = arith.addf %151, %150 : vector<2x96xf32>
    %153 = arith.divf %151, %152 : vector<2x96xf32>
    %154 = vector.extract_strided_slice %147 {offsets = [0, 96], sizes = [2, 32], strides = [1, 1]} : vector<2x128xf32> to vector<2x32xf32>
    %155 = math.tanh %154 : vector<2x32xf32>
    %156 = vector.extract_strided_slice %153 {offsets = [0, 0], sizes = [2, 32], strides = [1, 1]} : vector<2x96xf32> to vector<2x32xf32>
    %157 = vector.extract_strided_slice %153 {offsets = [0, 32], sizes = [2, 32], strides = [1, 1]} : vector<2x96xf32> to vector<2x32xf32>
    %158 = vector.extract_strided_slice %153 {offsets = [0, 64], sizes = [2, 32], strides = [1, 1]} : vector<2x96xf32> to vector<2x32xf32>
    %159 = arith.mulf %157, %138 : vector<2x32xf32>
    %160 = arith.mulf %156, %155 : vector<2x32xf32>
    %161 = arith.addf %159, %160 : vector<2x32xf32>
    %162 = math.tanh %161 : vector<2x32xf32>
    %163 = arith.mulf %158, %162 : vector<2x32xf32>
    %c0_52 = arith.constant 0 : index
    %c6_53 = arith.constant 6 : index
    %c0_54 = arith.constant 0 : index
    %164 = vector.load %arg3[%c0_52, %c6_53, %c0_54] : memref<2x8x32xf32, #tpu.memory_space<vmem>>, vector<2x1x32xf32>
    %165 = vector.shape_cast %164 : vector<2x1x32xf32> to vector<2x32xf32>
    %166 = vector.shape_cast %163 : vector<2x32xf32> to vector<2x1x32xf32>
    tpu.vector_store %arg3[%c0_52, %c6_53, %c0_54], %166 {strides = array<i32>} : memref<2x8x32xf32, #tpu.memory_space<vmem>>, vector<2x1x32xf32>,
    %c0_55 = arith.constant 0 : index
    %c7 = arith.constant 7 : index
    %c0_56 = arith.constant 0 : index
    %167 = vector.load %arg1[%c0_55, %c7, %c0_56] : memref<2x8x128xf32, #tpu.memory_space<vmem>>, vector<2x1x128xf32>
    %168 = vector.shape_cast %167 : vector<2x1x128xf32> to vector<2x128xf32>
    %cst_57 = arith.constant dense<0.000000e+00> : vector<2x128xf32>
    %169 = tpu.matmul %163, %3, %cst_57 {dimension_numbers = #tpu.dot_dimension_numbers<[1], [0], [0], [1], [0, 0, 1, 1], [], []>} : vector<2x32xf32>, vector<32x128xf32>, vector<2x128xf32> -> vector<2x128xf32>
    %170 = arith.addf %168, %169 : vector<2x128xf32>
    %171 = vector.extract_strided_slice %170 {offsets = [0, 0], sizes = [2, 96], strides = [1, 1]} : vector<2x128xf32> to vector<2x96xf32>
    %172 = arith.negf %171 : vector<2x96xf32>
    %173 = math.exp %172 : vector<2x96xf32>
    %cst_58 = arith.constant 1.000000e+00 : f32
    %174 = vector.broadcast %cst_58 : f32 to vector<2x96xf32>
    %175 = arith.addf %174, %173 : vector<2x96xf32>
    %176 = arith.divf %174, %175 : vector<2x96xf32>
    %177 = vector.extract_strided_slice %170 {offsets = [0, 96], sizes = [2, 32], strides = [1, 1]} : vector<2x128xf32> to vector<2x32xf32>
    %178 = math.tanh %177 : vector<2x32xf32>
    %179 = vector.extract_strided_slice %176 {offsets = [0, 0], sizes = [2, 32], strides = [1, 1]} : vector<2x96xf32> to vector<2x32xf32>
    %180 = vector.extract_strided_slice %176 {offsets = [0, 32], sizes = [2, 32], strides = [1, 1]} : vector<2x96xf32> to vector<2x32xf32>
    %181 = vector.extract_strided_slice %176 {offsets = [0, 64], sizes = [2, 32], strides = [1, 1]} : vector<2x96xf32> to vector<2x32xf32>
    %182 = arith.mulf %180, %161 : vector<2x32xf32>
    %183 = arith.mulf %179, %178 : vector<2x32xf32>
    %184 = arith.addf %182, %183 : vector<2x32xf32>
    %185 = math.tanh %184 : vector<2x32xf32>
    %186 = arith.mulf %181, %185 : vector<2x32xf32>
    %c0_59 = arith.constant 0 : index
    %c7_60 = arith.constant 7 : index
    %c0_61 = arith.constant 0 : index
    %187 = vector.load %arg3[%c0_59, %c7_60, %c0_61] : memref<2x8x32xf32, #tpu.memory_space<vmem>>, vector<2x1x32xf32>
    %188 = vector.shape_cast %187 : vector<2x1x32xf32> to vector<2x32xf32>
    %189 = vector.shape_cast %186 : vector<2x32xf32> to vector<2x1x32xf32>
    tpu.vector_store %arg3[%c0_59, %c7_60, %c0_61], %189 {strides = array<i32>} : memref<2x8x32xf32, #tpu.memory_space<vmem>>, vector<2x1x32xf32>,
    %c0_62 = arith.constant 0 : index
    %c0_63 = arith.constant 0 : index
    %190 = vector.load %arg4[%c0_62, %c0_63] : memref<2x32xf32, #tpu.memory_space<vmem>>, vector<2x32xf32>
    tpu.vector_store %arg4[%c0_62, %c0_63], %186 {strides = array<i32>} : memref<2x32xf32, #tpu.memory_space<vmem>>, vector<2x32xf32>,
    %c0_64 = arith.constant 0 : index
    %c0_65 = arith.constant 0 : index
    %191 = vector.load %arg5[%c0_64, %c0_65] : memref<2x32xf32, #tpu.memory_space<vmem>>, vector<2x32xf32>
    tpu.vector_store %arg5[%c0_64, %c0_65], %184 {strides = array<i32>} : memref<2x32xf32, #tpu.memory_space<vmem>>, vector<2x32xf32>,
    return
  }
  func.func @transform_0(%arg0: i32) -> (i32, i32, i32) {
    %c0_i32 = arith.constant 0 : i32
    %c0_i32_0 = arith.constant 0 : i32
    %c0_i32_1 = arith.constant 0 : i32
    return %c0_i32, %arg0, %c0_i32_0 : i32, i32, i32
  }
  func.func @transform_1(%arg0: i32) -> (i32, i32) {
    %c0_i32 = arith.constant 0 : i32
    %c0_i32_0 = arith.constant 0 : i32
    %c0_i32_1 = arith.constant 0 : i32
    return %c0_i32, %c0_i32_0 : i32, i32
  }
  func.func @transform_2(%arg0: i32) -> (i32, i32, i32) {
    %c0_i32 = arith.constant 0 : i32
    %c0_i32_0 = arith.constant 0 : i32
    %c0_i32_1 = arith.constant 0 : i32
    return %c0_i32, %arg0, %c0_i32_0 : i32, i32, i32
  }
}

</mosaic_0001>

<llo_original>
// kernel: decoder_forward.1
$region0: #{decoder_forward.1}
  #allocation0 [shape = 'u32[]', space=smem, size = 0x4, offset = 0x4, fixed_abs, tag = 'smem constant byte address 0x4 - core index']
  #allocation1 [shape = 'u32[72,128]{1,0:T(1,128)}', space=vmem, size = 0x9000, scoped, tag = 'internal scratch']
  #allocation2 [shape = 'f32[2,32]{1,0:T(2,128)}', space=vmem, size = 0x400, scoped, tag = 'scratch operand']
  #allocation3 [shape = 'f32[2,32]{1,0:T(2,128)}', space=vmem, size = 0x400, scoped, tag = 'scratch operand']
  %s0 = inlined_call_operand.vmem [shape: f32[2,16,128], index: 0, kind: input, shape index: {}]
  %s1 = inlined_call_operand.vmem [shape: f32[32,128], index: 1, kind: input, shape index: {}]
  %s2 = inlined_call_operand.hbm [shape: f32[2,16,32], index: 2, kind: output, shape index: {}]
  %s3 = sld [smem:[#allocation0]]
  $region83: #{decoder_forward.1} parent=0
    _
  %s5 = ssub.s32 1, %s3
  %s6 = scalar_select 0, %s5, %s3
  $region1: #{decoder_forward.1} parent=0
    #allocation4 [shape = 'u8[16384]{0}', space=vmem, size = 0x4000, scoped, tag = 'input window, operand 0']
    #allocation5 [shape = 'u8[16384]{0}', space=vmem, size = 0x4000, scoped, tag = 'output window, operand 0']
    #allocation6 [shape = 's32[2]{0}', space=sflag, size = 0x8, scoped, tag = 'scoped memory for decoder_forward.1']
    %7 = vsyncpa [#allocation6], 0
    %s8 = scalar_lea.sflag [#allocation6], 1
    %9 = vsyncpa %s8, 0
    loop: start=0, step=1, limit=4
    $region2: #{decoder_forward.1} parent=1 // loop_pre_header
      _
    $region3: #{decoder_forward.1} parent=1 // loop_header
      %s11 = sphi 0, %s15
      %p12 = scmp.ge.s32.totalorder %s11, 4
      %s21 = sphi 0, %s23
      %s24 = sphi 0, %s21
      %s25 = sphi 0, %s24
      %s41 = sphi 0, %s25
      %s45 = sphi 0, %s45
      %s47 = sphi 0, %s45
      %s48 = sphi 0, %s47
      %s62 = sphi 0, %s48
      %s68 = sphi 0, %s70
      %s71 = sphi 0, %s68
      %s72 = sphi 0, %s71
      %s88 = sphi 0, %s72
    $region4: #{decoder_forward.1} parent=1 // loop_header_branch
      %14 = sbr.rel (%p12) target = $region8
    $region5: #{decoder_forward.1} parent=1 // loop_body
      %s16 = ssub.s32 %s11, 1
      %s17 = ssub.s32 %s11, 2
      %s18 = sadd.s32 %s11, 1
      %s19 = ssub.s32 %s11, %s18
      %p20 = scmp.eq.s32.totalorder %s19, 0
      %s22 = sadd.s32 %s21, 1
      %s23 = scalar_select %p20, %s21, %s22
      %p26 = pneg %p20
      %p27 = scmp.eq.s32.totalorder %s11, 1
      %p28 = por %p26, %p27
      %p29 = scmp.ne.s32.totalorder %s21, %s24
      %p30 = scmp.eq.s32.totalorder %s11, 0
      %p31 = por %p29, %p30
      %p32 = scmp.ne.s32.totalorder %s21, %s24
      %p33 = scmp.eq.s32.totalorder %s16, 1
      %p34 = por %p32, %p33
      %p35 = scmp.ne.s32.totalorder %s24, %s25
      %p36 = scmp.eq.s32.totalorder %s16, 0
      %p37 = por %p35, %p36
      %p38 = scmp.ne.s32.totalorder %s24, %s25
      %p39 = scmp.eq.s32.totalorder %s17, 1
      %p40 = por %p38, %p39
      %p42 = scmp.ne.s32.totalorder %s25, %s41
      %p43 = scmp.eq.s32.totalorder %s17, 0
      %p44 = por %p42, %p43
      %s46 = sadd.s32 %s45, 1
      %p49 = scmp.eq.s32.totalorder %s11, 1
      %p50 = scmp.ne.s32.totalorder %s45, %s47
      %p51 = scmp.eq.s32.totalorder %s11, 0
      %p52 = por %p50, %p51
      %p53 = scmp.ne.s32.totalorder %s45, %s47
      %p54 = scmp.eq.s32.totalorder %s16, 1
      %p55 = por %p53, %p54
      %p56 = scmp.ne.s32.totalorder %s47, %s48
      %p57 = scmp.eq.s32.totalorder %s16, 0
      %p58 = por %p56, %p57
      %p59 = scmp.ne.s32.totalorder %s47, %s48
      %p60 = scmp.eq.s32.totalorder %s17, 1
      %p61 = por %p59, %p60
      %p63 = scmp.ne.s32.totalorder %s48, %s62
      %p64 = scmp.eq.s32.totalorder %s17, 0
      %p65 = por %p63, %p64
      %s66 = ssub.s32 %s11, %s18
      %p67 = scmp.eq.s32.totalorder %s66, 0
      %s69 = sadd.s32 %s68, 1
      %s70 = scalar_select %p67, %s68, %s69
      %p73 = pneg %p67
      %p74 = scmp.eq.s32.totalorder %s11, 1
      %p75 = por %p73, %p74
      %p76 = scmp.ne.s32.totalorder %s68, %s71
      %p77 = scmp.eq.s32.totalorder %s11, 0
      %p78 = por %p76, %p77
      %p79 = scmp.ne.s32.totalorder %s68, %s71
      %p80 = scmp.eq.s32.totalorder %s16, 1
      %p81 = por %p79, %p80
      %p82 = scmp.ne.s32.totalorder %s71, %s72
      %p83 = scmp.eq.s32.totalorder %s16, 0
      %p84 = por %p82, %p83
      %p85 = scmp.ne.s32.totalorder %s71, %s72
      %p86 = scmp.eq.s32.totalorder %s17, 1
      %p87 = por %p85, %p86
      %p89 = scmp.ne.s32.totalorder %s72, %s88
      %p90 = scmp.eq.s32.totalorder %s17, 0
      %p91 = por %p89, %p90
      %p92 = scmp.le.s32.totalorder 1, %s11
      %p93 = scmp.lt.s32.totalorder %s11, 3
      %p94 = pnand %p92, %p93
      %p95 = pneg %p94
      // Predicated region
      $region9: #{decoder_forward.1} parent=5 // pred_check
        _
      $region10: #{decoder_forward.1} parent=5 // pred_check_branch
        %97 = sbr.rel (%p94) target = $region12
      $region11: #{decoder_forward.1} parent=5 // pred_region
        %s98 = ssub.s32 %s11, 1
        // Predicated region
        $region13: #{decoder_forward.1} parent=11 // pred_check
          %p99 = pneg %p58
        $region14: #{decoder_forward.1} parent=11 // pred_check_branch
          %101 = sbr.rel (%p99) target = $region16
        $region15: #{decoder_forward.1} parent=11 // pred_region
          _
        $region16: #{decoder_forward.1} parent=11 // pred_fallthru
          _
      $region12: #{decoder_forward.1} parent=5 // pred_fallthru
        _
      %p102 = scmp.lt.s32.totalorder %s11, 2
      // Predicated region
      $region17: #{decoder_forward.1} parent=5 // pred_check
        %p103 = pneg %p102
      $region18: #{decoder_forward.1} parent=5 // pred_check_branch
        %105 = sbr.rel (%p103) target = $region20
      $region19: #{decoder_forward.1} parent=5 // pred_region
        // Predicated region
        $region21: #{decoder_forward.1} parent=19 // pred_check
          %p106 = pneg %p31
        $region22: #{decoder_forward.1} parent=19 // pred_check_branch
          %108 = sbr.rel (%p106) target = $region24
        $region23: #{decoder_forward.1} parent=19 // pred_region
          %s109 = sand.u32 %s21, 1
          %s110 = sand.u32 %s21, 1
          %s111 = smul.addr %s110, 16
          %s112 = scalar_lea.vmem [#allocation4], %s111
          %s113 = smul.addr %s11, 8
          %s114 = scalar_lea.vmem %s0, %s113
          // Predicated region
          $region25: #{decoder_forward.1} parent=23 // pred_check
            _
          $region26: #{decoder_forward.1} parent=23 // pred_check_branch
            %116 = sbr.rel (0) target = $region28
          $region27: #{decoder_forward.1} parent=23 // pred_region
            // Predicated region
            $region29: #{decoder_forward.1} parent=27 // pred_check
              _
            $region30: #{decoder_forward.1} parent=27 // pred_check_branch
              %118 = sbr.rel (0) target = $region32
            $region31: #{decoder_forward.1} parent=27 // pred_region
              // Predicated region
              $region44: #{decoder_forward.1} parent=31 // pred_check
                _
              $region45: #{decoder_forward.1} parent=31 // pred_check_branch
                %136 = sbr.rel (0) target = $region47
              $region46: #{decoder_forward.1} parent=31 // pred_region
                loop: start=0, step=1, limit=1
                $region48: #{decoder_forward.1} parent=46 // loop_pre_header
                  _
                $region49: #{decoder_forward.1} parent=46 // loop_header
                  %s138 = sphi 0, %s142
                  %p139 = scmp.ge.s32.totalorder %s138, 1
                  %s143 = sphi %s114, %s114
                  %s144 = sphi %s112, %s112
                $region50: #{decoder_forward.1} parent=46 // loop_header_branch
                  %141 = sbr.rel (%p139) target = $region54
                $region51: #{decoder_forward.1} parent=46 // loop_body
                  %v145 = vld [vmem:[%s143] sm:$0xff]
                  %146 = vst [vmem:[%s144] sm:$0xff] %v145
                  %v147 = vld [vmem:[%s143 + $0x10] sm:$0xff]
                  %148 = vst [vmem:[%s144 + $0x8] sm:$0xff] %v147
                $region52: #{decoder_forward.1} parent=46 // loop_footer
                  %s142 = sadd.s32 1, %s138
                $region53: #{decoder_forward.1} parent=46 // loop_footer_branch
                  %137 = sbr.rel target = $region49
                $region54: #{decoder_forward.1} parent=46 // loop_exit
                  _
              $region47: #{decoder_forward.1} parent=31 // pred_fallthru
                _
              // Predicated region
              $region55: #{decoder_forward.1} parent=31 // pred_check
                _
              $region56: #{decoder_forward.1} parent=31 // pred_check_branch
                %150 = sbr.rel target = $region58
              $region57: #{decoder_forward.1} parent=31 // pred_region
                _
              $region58: #{decoder_forward.1} parent=31 // pred_fallthru
                _
            $region32: #{decoder_forward.1} parent=27 // pred_fallthru
              _
            // Predicated region
            $region33: #{decoder_forward.1} parent=27 // pred_check
              _
            $region34: #{decoder_forward.1} parent=27 // pred_check_branch
              %120 = sbr.rel target = $region36
            $region35: #{decoder_forward.1} parent=27 // pred_region
              %s122 = ssub.s32 256, 1
              loop: start=0, step=1, limit=1
              $region37: #{decoder_forward.1} parent=35 // loop_pre_header
                _
              $region38: #{decoder_forward.1} parent=35 // loop_header
                %s124 = sphi 0, %s128
                %p125 = scmp.ge.s32.totalorder %s124, 1
                %s129 = sphi %s114, %s114
                %s130 = sphi %s112, %s112
              $region39: #{decoder_forward.1} parent=35 // loop_header_branch
                %127 = sbr.rel (%p125) target = $region43
              $region40: #{decoder_forward.1} parent=35 // loop_body
                %v131 = vld [vmem:[%s129] sm:%s122]
                %132 = vst [vmem:[%s130] sm:%s122] %v131
                %v133 = vld [vmem:[%s129 + $0x10] sm:%s122]
                %134 = vst [vmem:[%s130 + $0x8] sm:%s122] %v133
              $region41: #{decoder_forward.1} parent=35 // loop_footer
                %s128 = sadd.s32 1, %s124
              $region42: #{decoder_forward.1} parent=35 // loop_footer_branch
                %123 = sbr.rel target = $region38
              $region43: #{decoder_forward.1} parent=35 // loop_exit
                _
            $region36: #{decoder_forward.1} parent=27 // pred_fallthru
              _
          $region28: #{decoder_forward.1} parent=23 // pred_fallthru
            _
          %151 = vnop
        $region24: #{decoder_forward.1} parent=19 // pred_fallthru
          _
      $region20: #{decoder_forward.1} parent=5 // pred_fallthru
        _
      %p152 = scmp.le.s32.totalorder 1, %s11
      %p153 = scmp.lt.s32.totalorder %s11, 3
      %p154 = pnand %p152, %p153
      %p155 = pneg %p154
      // Predicated region
      $region59: #{decoder_forward.1} parent=5 // pred_check
        _
      $region60: #{decoder_forward.1} parent=5 // pred_check_branch
        %157 = sbr.rel (%p154) target = $region62
      $region61: #{decoder_forward.1} parent=5 // pred_region
        %s158 = ssub.s32 %s11, 1
        %s159 = sand.u32 %s24, 1
        %s160 = sand.u32 %s24, 1
        %s161 = smul.addr %s160, 16
        %s162 = scalar_lea.vmem [#allocation4], %s161
        // Predicated region
        $region63: #{decoder_forward.1} parent=61 // pred_check
          %p163 = pneg %p37
        $region64: #{decoder_forward.1} parent=61 // pred_check_branch
          %165 = sbr.rel (%p163) target = $region66
        $region65: #{decoder_forward.1} parent=61 // pred_region
          _
        $region66: #{decoder_forward.1} parent=61 // pred_fallthru
          _
        %s166 = sand.u32 %s24, 1
        %s167 = sand.u32 %s24, 1
        %s168 = smul.addr %s167, 16
        %s169 = scalar_lea.vmem [#allocation4], %s168
        %p170 = pneg %p37
        %p171 = pneg %p34
        %p172 = pneg %p58
        %p173 = pneg %p55
        %p174 = pneg %p84
        %p175 = pneg %p81
        %s176 = sand.u32 %s71, 1
        %s177 = scalar_lea.sflag [#allocation6], %s176
        %s178 = sand.u32 %s71, 1
        %s179 = smul.addr %s178, 16
        %s180 = scalar_lea.vmem [#allocation5], %s179
        %p181 = scmp.eq.s32.totalorder %s16, 0
        // Predicated region
        $region67: #{decoder_forward.1} parent=61 // pred_check
          %p182 = pneg %p181
        $region68: #{decoder_forward.1} parent=61 // pred_check_branch
          %184 = sbr.rel (%p182) target = $region70
        $region69: #{decoder_forward.1} parent=61 // pred_region
          %vm185 = vcmask 254976
          %186 = vst.msk [vmem:[#allocation2] sm:$0x3] %vm185, 0.0
          %187 = vst.msk [vmem:[#allocation3] sm:$0x3] %vm185, 0.0
        $region70: #{decoder_forward.1} parent=61 // pred_fallthru
          _
        %v188 = vld [vmem:[%s1] sm:$0xff]
        %v189 = vld [vmem:[%s1 + $0x8] sm:$0xff]
        %v190 = vld [vmem:[%s1 + $0x10] sm:$0xff]
        %v191 = vld [vmem:[%s1 + $0x18] sm:$0xff]
        %v192 = vld [vmem:[#allocation2] sm:$0x3]
        %v193 = vld [vmem:[#allocation3] sm:$0x3]
        %v194 = vld [vmem:[%s162] sm:$0x1]
        %v195 = vld [vmem:[%s162 + $0x8] sm:$0x1]
        %vm196 = vcmask 261120
        %v198 = vsel %vm196, %v192, 0
        %200 = vmatpush.msra.mxu0 0.0
        %201 = vmatpush.msra.mxu0 0.0
        %202 = vmatpush.msra.mxu0 0.0
        %203 = vmatpush.msra.mxu0 0.0
        %204 = vmatpush.msra.mxu0 0.0
        %205 = vmatpush.msra.mxu0 0.0
        %206 = vmatpush.msra.mxu0 0.0
        %207 = vmatpush.msra.mxu0 0.0
        %208 = vmatpush.msra.mxu0 0.0
        %209 = vmatpush.msra.mxu0 0.0
        %210 = vmatpush.msra.mxu0 0.0
        %211 = vmatpush.msra.mxu0 0.0
        %212 = vmatpush.msra.mxu0 %v191
        %213 = vmatpush.msra.mxu0 %v190
        %214 = vmatpush.msra.mxu0 %v189
        %215 = vmatpush.msra.mxu0 %v188
        %216 = vmatmul.f32.gmra.mxu0 %v198
        %v217 = vpop.f32.mrf.mxu0
        %v218 = vadd.f32 0.0, %v217
        %219 = vdwg.mxu0
        %v221 = vrot.slane %v218, 1
        %v224 = vadd.f32 %v194, %v218
        %v225 = vadd.f32 %v195, %v221
        %v226 = vxor.u32 %v224, 2147483648
        %v227 = vxor.u32 %v225, 2147483648
        %v228 = vmul.f32 %v226, 1.442695
        %v229 = vpow.pop %v228
        %v230 = vmul.f32 %v227, 1.442695
        %v231 = vpow.pop %v230
        %v232 = vadd.f32 %v229, 1.0
        %v233 = vadd.f32 %v231, 1.0
        %v234 = vrcp.pop %v232
        %v235 = vmul.f32 %v232, %v234
        %v236 = vsub.f32 1.0, %v235
        %v237 = vmul.f32 %v234, %v236
        %v238 = vadd.f32 %v234, %v237
        %vm239 = vweird.f32 %v232
        %vm240 = vweird.f32 %v234
        %vm241 = vmor %vm239, %vm240
        %v242 = vsel %vm241, %v234, %v238
        %v243 = vand.u32 2147483647, %v232
        %vm244 = vcmp.eq.f32.partialorder %v243, 8.507059e+37
        %v245 = vand.u32 %v232, 2147483648
        %v246 = vor.u32 1.1754944e-38, %v245
        %v247 = vsel %vm244, %v246, %v242
        %v248 = vmul.f32 1.0, %v247
        %v249 = vrcp.pop %v233
        %v250 = vmul.f32 %v233, %v249
        %v251 = vsub.f32 1.0, %v250
        %v252 = vmul.f32 %v249, %v251
        %v253 = vadd.f32 %v249, %v252
        %vm254 = vweird.f32 %v233
        %vm255 = vweird.f32 %v249
        %vm256 = vmor %vm254, %vm255
        %v257 = vsel %vm256, %v249, %v253
        %v258 = vand.u32 2147483647, %v233
        %vm259 = vcmp.eq.f32.partialorder %v258, 8.507059e+37
        %v260 = vand.u32 %v233, 2147483648
        %v261 = vor.u32 1.1754944e-38, %v260
        %v262 = vsel %vm259, %v261, %v257
        %v263 = vmul.f32 1.0, %v262
        %v264 = vtanh.pop %v224
        %v265 = vtanh.pop %v225
        %v267 = vrot.slane %v193, 1
        %268 = vrot.lane.b32.xlu0 %v193, 32
        %v269 = vpop.permute.xlu0 %268
        %270 = vrot.lane.b32.xlu0 %v267, 32
        %v271 = vpop.permute.xlu0 %270
        %v274 = vmul.f32 %v248, %v269
        %v275 = vmul.f32 %v263, %v271
        %278 = vrot.lane.b32.xlu0 %v264, 32
        %v279 = vpop.permute.xlu0 %278
        %280 = vrot.lane.b32.xlu0 %v265, 32
        %v281 = vpop.permute.xlu0 %280
        %v284 = vmul.f32 %v248, %v279
        %v285 = vmul.f32 %v263, %v281
        %288 = vrot.lane.b32.xlu0 %v284, 32
        %v289 = vpop.permute.xlu0 %288
        %290 = vrot.lane.b32.xlu0 %v285, 32
        %v291 = vpop.permute.xlu0 %290
        %v294 = vadd.f32 %v274, %v289
        %v295 = vadd.f32 %v275, %v291
        %v296 = vtanh.pop %v294
        %v297 = vtanh.pop %v295
        %300 = vrot.lane.b32.xlu0 %v296, 32
        %v301 = vpop.permute.xlu0 %300
        %302 = vrot.lane.b32.xlu0 %v297, 32
        %v303 = vpop.permute.xlu0 %302
        %v306 = vmul.f32 %v248, %v301
        %v307 = vmul.f32 %v263, %v303
        %310 = vrot.lane.b32.xlu0 %v306, 64
        %v311 = vpop.permute.xlu0 %310
        %312 = vrot.lane.b32.xlu0 %v307, 64
        %v313 = vpop.permute.xlu0 %312
        %vm316 = vcmask 253952
        %317 = vst.msk [vmem:[%s180] sm:$0x1] %vm316, %v311
        %318 = vst.msk [vmem:[%s180 + $0x8] sm:$0x1] %vm316, %v313
        %v319 = vld [vmem:[%s162 + $0x1] sm:$0x1]
        %v320 = vld [vmem:[%s162 + $0x9] sm:$0x1]
        %v321 = vrot.slane %v307, 7
        %vm322 = vcmask 1041409
        %v323 = vsel %vm322, %v321, %v306
        %324 = vrot.lane.b32.xlu0 %v323, 64
        %v325 = vpop.permute.xlu0 %324
        %v326 = vsel %vm196, %v325, 0
        %328 = vmatpush.msra.mxu0 0.0
        %329 = vmatpush.msra.mxu0 0.0
        %330 = vmatpush.msra.mxu0 0.0
        %331 = vmatpush.msra.mxu0 0.0
        %332 = vmatpush.msra.mxu0 0.0
        %333 = vmatpush.msra.mxu0 0.0
        %334 = vmatpush.msra.mxu0 0.0
        %335 = vmatpush.msra.mxu0 0.0
        %336 = vmatpush.msra.mxu0 0.0
        %337 = vmatpush.msra.mxu0 0.0
        %338 = vmatpush.msra.mxu0 0.0
        %339 = vmatpush.msra.mxu0 0.0
        %340 = vmatpush.msra.mxu0 %v191
        %341 = vmatpush.msra.mxu0 %v190
        %342 = vmatpush.msra.mxu0 %v189
        %343 = vmatpush.msra.mxu0 %v188
        %344 = vmatmul.f32.gmra.mxu0 %v326
        %v345 = vpop.f32.mrf.mxu0
        %v346 = vadd.f32 0.0, %v345
        %347 = vdwg.mxu0
        %v349 = vrot.slane %v346, 1
        %v352 = vadd.f32 %v319, %v346
        %v353 = vadd.f32 %v320, %v349
        %v354 = vxor.u32 %v352, 2147483648
        %v355 = vxor.u32 %v353, 2147483648
        %v356 = vmul.f32 %v354, 1.442695
        %v357 = vpow.pop %v356
        %v358 = vmul.f32 %v355, 1.442695
        %v359 = vpow.pop %v358
        %v360 = vadd.f32 %v357, 1.0
        %v361 = vadd.f32 %v359, 1.0
        %v362 = vrcp.pop %v360
        %v363 = vmul.f32 %v360, %v362
        %v364 = vsub.f32 1.0, %v363
        %v365 = vmul.f32 %v362, %v364
        %v366 = vadd.f32 %v362, %v365
        %vm367 = vweird.f32 %v360
        %vm368 = vweird.f32 %v362
        %vm369 = vmor %vm367, %vm368
        %v370 = vsel %vm369, %v362, %v366
        %v371 = vand.u32 2147483647, %v360
        %vm372 = vcmp.eq.f32.partialorder %v371, 8.507059e+37
        %v373 = vand.u32 %v360, 2147483648
        %v374 = vor.u32 1.1754944e-38, %v373
        %v375 = vsel %vm372, %v374, %v370
        %v376 = vmul.f32 1.0, %v375
        %v377 = vrcp.pop %v361
        %v378 = vmul.f32 %v361, %v377
        %v379 = vsub.f32 1.0, %v378
        %v380 = vmul.f32 %v377, %v379
        %v381 = vadd.f32 %v377, %v380
        %vm382 = vweird.f32 %v361
        %vm383 = vweird.f32 %v377
        %vm384 = vmor %vm382, %vm383
        %v385 = vsel %vm384, %v377, %v381
        %v386 = vand.u32 2147483647, %v361
        %vm387 = vcmp.eq.f32.partialorder %v386, 8.507059e+37
        %v388 = vand.u32 %v361, 2147483648
        %v389 = vor.u32 1.1754944e-38, %v388
        %v390 = vsel %vm387, %v389, %v385
        %v391 = vmul.f32 1.0, %v390
        %v392 = vtanh.pop %v352
        %v393 = vtanh.pop %v353
        %v394 = vmul.f32 %v376, %v294
        %v395 = vmul.f32 %v391, %v295
        %398 = vrot.lane.b32.xlu0 %v392, 32
        %v399 = vpop.permute.xlu0 %398
        %400 = vrot.lane.b32.xlu0 %v393, 32
        %v401 = vpop.permute.xlu0 %400
        %v404 = vmul.f32 %v376, %v399
        %v405 = vmul.f32 %v391, %v401
        %408 = vrot.lane.b32.xlu0 %v404, 32
        %v409 = vpop.permute.xlu0 %408
        %410 = vrot.lane.b32.xlu0 %v405, 32
        %v411 = vpop.permute.xlu0 %410
        %v414 = vadd.f32 %v394, %v409
        %v415 = vadd.f32 %v395, %v411
        %v416 = vtanh.pop %v414
        %v417 = vtanh.pop %v415
        %420 = vrot.lane.b32.xlu0 %v416, 32
        %v421 = vpop.permute.xlu0 %420
        %422 = vrot.lane.b32.xlu0 %v417, 32
        %v423 = vpop.permute.xlu0 %422
        %v426 = vmul.f32 %v376, %v421
        %v427 = vmul.f32 %v391, %v423
        %430 = vrot.lane.b32.xlu0 %v426, 64
        %v431 = vpop.permute.xlu0 %430
        %432 = vrot.lane.b32.xlu0 %v427, 64
        %v433 = vpop.permute.xlu0 %432
        %436 = vst.msk [vmem:[%s180 + $0x1] sm:$0x1] %vm316, %v431
        %437 = vst.msk [vmem:[%s180 + $0x9] sm:$0x1] %vm316, %v433
        %v438 = vld [vmem:[%s162 + $0x2] sm:$0x1]
        %v439 = vld [vmem:[%s162 + $0xa] sm:$0x1]
        %v440 = vrot.slane %v427, 7
        %v441 = vsel %vm322, %v440, %v426
        %442 = vrot.lane.b32.xlu0 %v441, 64
        %v443 = vpop.permute.xlu0 %442
        %v444 = vsel %vm196, %v443, 0
        %446 = vmatpush.msra.mxu0 0.0
        %447 = vmatpush.msra.mxu0 0.0
        %448 = vmatpush.msra.mxu0 0.0
        %449 = vmatpush.msra.mxu0 0.0
        %450 = vmatpush.msra.mxu0 0.0
        %451 = vmatpush.msra.mxu0 0.0
        %452 = vmatpush.msra.mxu0 0.0
        %453 = vmatpush.msra.mxu0 0.0
        %454 = vmatpush.msra.mxu0 0.0
        %455 = vmatpush.msra.mxu0 0.0
        %456 = vmatpush.msra.mxu0 0.0
        %457 = vmatpush.msra.mxu0 0.0
        %458 = vmatpush.msra.mxu0 %v191
        %459 = vmatpush.msra.mxu0 %v190
        %460 = vmatpush.msra.mxu0 %v189
        %461 = vmatpush.msra.mxu0 %v188
        %462 = vmatmul.f32.gmra.mxu0 %v444
        %v463 = vpop.f32.mrf.mxu0
        %v464 = vadd.f32 0.0, %v463
        %465 = vdwg.mxu0
        %v467 = vrot.slane %v464, 1
        %v470 = vadd.f32 %v438, %v464
        %v471 = vadd.f32 %v439, %v467
        %v472 = vxor.u32 %v470, 2147483648
        %v473 = vxor.u32 %v471, 2147483648
        %v474 = vmul.f32 %v472, 1.442695
        %v475 = vpow.pop %v474
        %v476 = vmul.f32 %v473, 1.442695
        %v477 = vpow.pop %v476
        %v478 = vadd.f32 %v475, 1.0
        %v479 = vadd.f32 %v477, 1.0
        %v480 = vrcp.pop %v478
        %v481 = vmul.f32 %v478, %v480
        %v482 = vsub.f32 1.0, %v481
        %v483 = vmul.f32 %v480, %v482
        %v484 = vadd.f32 %v480, %v483
        %vm485 = vweird.f32 %v478
        %vm486 = vweird.f32 %v480
        %vm487 = vmor %vm485, %vm486
        %v488 = vsel %vm487, %v480, %v484
        %v489 = vand.u32 2147483647, %v478
        %vm490 = vcmp.eq.f32.partialorder %v489, 8.507059e+37
        %v491 = vand.u32 %v478, 2147483648
        %v492 = vor.u32 1.1754944e-38, %v491
        %v493 = vsel %vm490, %v492, %v488
        %v494 = vmul.f32 1.0, %v493
        %v495 = vrcp.pop %v479
        %v496 = vmul.f32 %v479, %v495
        %v497 = vsub.f32 1.0, %v496
        %v498 = vmul.f32 %v495, %v497
        %v499 = vadd.f32 %v495, %v498
        %vm500 = vweird.f32 %v479
        %vm501 = vweird.f32 %v495
        %vm502 = vmor %vm500, %vm501
        %v503 = vsel %vm502, %v495, %v499
        %v504 = vand.u32 2147483647, %v479
        %vm505 = vcmp.eq.f32.partialorder %v504, 8.507059e+37
        %v506 = vand.u32 %v479, 2147483648
        %v507 = vor.u32 1.1754944e-38, %v506
        %v508 = vsel %vm505, %v507, %v503
        %v509 = vmul.f32 1.0, %v508
        %v510 = vtanh.pop %v470
        %v511 = vtanh.pop %v471
        %v512 = vmul.f32 %v494, %v414
        %v513 = vmul.f32 %v509, %v415
        %516 = vrot.lane.b32.xlu0 %v510, 32
        %v517 = vpop.permute.xlu0 %516
        %518 = vrot.lane.b32.xlu0 %v511, 32
        %v519 = vpop.permute.xlu0 %518
        %v522 = vmul.f32 %v494, %v517
        %v523 = vmul.f32 %v509, %v519
        %526 = vrot.lane.b32.xlu0 %v522, 32
        %v527 = vpop.permute.xlu0 %526
        %528 = vrot.lane.b32.xlu0 %v523, 32
        %v529 = vpop.permute.xlu0 %528
        %v532 = vadd.f32 %v512, %v527
        %v533 = vadd.f32 %v513, %v529
        %v534 = vtanh.pop %v532
        %v535 = vtanh.pop %v533
        %538 = vrot.lane.b32.xlu0 %v534, 32
        %v539 = vpop.permute.xlu0 %538
        %540 = vrot.lane.b32.xlu0 %v535, 32
        %v541 = vpop.permute.xlu0 %540
        %v544 = vmul.f32 %v494, %v539
        %v545 = vmul.f32 %v509, %v541
        %548 = vrot.lane.b32.xlu0 %v544, 64
        %v549 = vpop.permute.xlu0 %548
        %550 = vrot.lane.b32.xlu0 %v545, 64
        %v551 = vpop.permute.xlu0 %550
        %554 = vst.msk [vmem:[%s180 + $0x2] sm:$0x1] %vm316, %v549
        %555 = vst.msk [vmem:[%s180 + $0xa] sm:$0x1] %vm316, %v551
        %v556 = vld [vmem:[%s162 + $0x3] sm:$0x1]
        %v557 = vld [vmem:[%s162 + $0xb] sm:$0x1]
        %v558 = vrot.slane %v545, 7
        %v559 = vsel %vm322, %v558, %v544
        %560 = vrot.lane.b32.xlu0 %v559, 64
        %v561 = vpop.permute.xlu0 %560
        %v562 = vsel %vm196, %v561, 0
        %564 = vmatpush.msra.mxu0 0.0
        %565 = vmatpush.msra.mxu0 0.0
        %566 = vmatpush.msra.mxu0 0.0
        %567 = vmatpush.msra.mxu0 0.0
        %568 = vmatpush.msra.mxu0 0.0
        %569 = vmatpush.msra.mxu0 0.0
        %570 = vmatpush.msra.mxu0 0.0
        %571 = vmatpush.msra.mxu0 0.0
        %572 = vmatpush.msra.mxu0 0.0
        %573 = vmatpush.msra.mxu0 0.0
        %574 = vmatpush.msra.mxu0 0.0
        %575 = vmatpush.msra.mxu0 0.0
        %576 = vmatpush.msra.mxu0 %v191
        %577 = vmatpush.msra.mxu0 %v190
        %578 = vmatpush.msra.mxu0 %v189
        %579 = vmatpush.msra.mxu0 %v188
        %580 = vmatmul.f32.gmra.mxu0 %v562
        %v581 = vpop.f32.mrf.mxu0
        %v582 = vadd.f32 0.0, %v581
        %583 = vdwg.mxu0
        %v585 = vrot.slane %v582, 1
        %v588 = vadd.f32 %v556, %v582
        %v589 = vadd.f32 %v557, %v585
        %v590 = vxor.u32 %v588, 2147483648
        %v591 = vxor.u32 %v589, 2147483648
        %v592 = vmul.f32 %v590, 1.442695
        %v593 = vpow.pop %v592
        %v594 = vmul.f32 %v591, 1.442695
        %v595 = vpow.pop %v594
        %v596 = vadd.f32 %v593, 1.0
        %v597 = vadd.f32 %v595, 1.0
        %v598 = vrcp.pop %v596
        %v599 = vmul.f32 %v596, %v598
        %v600 = vsub.f32 1.0, %v599
        %v601 = vmul.f32 %v598, %v600
        %v602 = vadd.f32 %v598, %v601
        %vm603 = vweird.f32 %v596
        %vm604 = vweird.f32 %v598
        %vm605 = vmor %vm603, %vm604
        %v606 = vsel %vm605, %v598, %v602
        %v607 = vand.u32 2147483647, %v596
        %vm608 = vcmp.eq.f32.partialorder %v607, 8.507059e+37
        %v609 = vand.u32 %v596, 2147483648
        %v610 = vor.u32 1.1754944e-38, %v609
        %v611 = vsel %vm608, %v610, %v606
        %v612 = vmul.f32 1.0, %v611
        %v613 = vrcp.pop %v597
        %v614 = vmul.f32 %v597, %v613
        %v615 = vsub.f32 1.0, %v614
        %v616 = vmul.f32 %v613, %v615
        %v617 = vadd.f32 %v613, %v616
        %vm618 = vweird.f32 %v597
        %vm619 = vweird.f32 %v613
        %vm620 = vmor %vm618, %vm619
        %v621 = vsel %vm620, %v613, %v617
        %v622 = vand.u32 2147483647, %v597
        %vm623 = vcmp.eq.f32.partialorder %v622, 8.507059e+37
        %v624 = vand.u32 %v597, 2147483648
        %v625 = vor.u32 1.1754944e-38, %v624
        %v626 = vsel %vm623, %v625, %v621
        %v627 = vmul.f32 1.0, %v626
        %v628 = vtanh.pop %v588
        %v629 = vtanh.pop %v589
        %v630 = vmul.f32 %v612, %v532
        %v631 = vmul.f32 %v627, %v533
        %634 = vrot.lane.b32.xlu0 %v628, 32
        %v635 = vpop.permute.xlu0 %634
        %636 = vrot.lane.b32.xlu0 %v629, 32
        %v637 = vpop.permute.xlu0 %636
        %v640 = vmul.f32 %v612, %v635
        %v641 = vmul.f32 %v627, %v637
        %644 = vrot.lane.b32.xlu0 %v640, 32
        %v645 = vpop.permute.xlu0 %644
        %646 = vrot.lane.b32.xlu0 %v641, 32
        %v647 = vpop.permute.xlu0 %646
        %v650 = vadd.f32 %v630, %v645
        %v651 = vadd.f32 %v631, %v647
        %v652 = vtanh.pop %v650
        %v653 = vtanh.pop %v651
        %656 = vrot.lane.b32.xlu0 %v652, 32
        %v657 = vpop.permute.xlu0 %656
        %658 = vrot.lane.b32.xlu0 %v653, 32
        %v659 = vpop.permute.xlu0 %658
        %v662 = vmul.f32 %v612, %v657
        %v663 = vmul.f32 %v627, %v659
        %666 = vrot.lane.b32.xlu0 %v662, 64
        %v667 = vpop.permute.xlu0 %666
        %668 = vrot.lane.b32.xlu0 %v663, 64
        %v669 = vpop.permute.xlu0 %668
        %672 = vst.msk [vmem:[%s180 + $0x3] sm:$0x1] %vm316, %v667
        %673 = vst.msk [vmem:[%s180 + $0xb] sm:$0x1] %vm316, %v669
        %v674 = vld [vmem:[%s162 + $0x4] sm:$0x1]
        %v675 = vld [vmem:[%s162 + $0xc] sm:$0x1]
        %v676 = vrot.slane %v663, 7
        %v677 = vsel %vm322, %v676, %v662
        %678 = vrot.lane.b32.xlu0 %v677, 64
        %v679 = vpop.permute.xlu0 %678
        %v680 = vsel %vm196, %v679, 0
        %682 = vmatpush.msra.mxu0 0.0
        %683 = vmatpush.msra.mxu0 0.0
        %684 = vmatpush.msra.mxu0 0.0
        %685 = vmatpush.msra.mxu0 0.0
        %686 = vmatpush.msra.mxu0 0.0
        %687 = vmatpush.msra.mxu0 0.0
        %688 = vmatpush.msra.mxu0 0.0
        %689 = vmatpush.msra.mxu0 0.0
        %690 = vmatpush.msra.mxu0 0.0
        %691 = vmatpush.msra.mxu0 0.0
        %692 = vmatpush.msra.mxu0 0.0
        %693 = vmatpush.msra.mxu0 0.0
        %694 = vmatpush.msra.mxu0 %v191
        %695 = vmatpush.msra.mxu0 %v190
        %696 = vmatpush.msra.mxu0 %v189
        %697 = vmatpush.msra.mxu0 %v188
        %698 = vmatmul.f32.gmra.mxu0 %v680
        %v699 = vpop.f32.mrf.mxu0
        %v700 = vadd.f32 0.0, %v699
        %701 = vdwg.mxu0
        %v703 = vrot.slane %v700, 1
        %v706 = vadd.f32 %v674, %v700
        %v707 = vadd.f32 %v675, %v703
        %v708 = vxor.u32 %v706, 2147483648
        %v709 = vxor.u32 %v707, 2147483648
        %v710 = vmul.f32 %v708, 1.442695
        %v711 = vpow.pop %v710
        %v712 = vmul.f32 %v709, 1.442695
        %v713 = vpow.pop %v712
        %v714 = vadd.f32 %v711, 1.0
        %v715 = vadd.f32 %v713, 1.0
        %v716 = vrcp.pop %v714
        %v717 = vmul.f32 %v714, %v716
        %v718 = vsub.f32 1.0, %v717
        %v719 = vmul.f32 %v716, %v718
        %v720 = vadd.f32 %v716, %v719
        %vm721 = vweird.f32 %v714
        %vm722 = vweird.f32 %v716
        %vm723 = vmor %vm721, %vm722
        %v724 = vsel %vm723, %v716, %v720
        %v725 = vand.u32 2147483647, %v714
        %vm726 = vcmp.eq.f32.partialorder %v725, 8.507059e+37
        %v727 = vand.u32 %v714, 2147483648
        %v728 = vor.u32 1.1754944e-38, %v727
        %v729 = vsel %vm726, %v728, %v724
        %v730 = vmul.f32 1.0, %v729
        %v731 = vrcp.pop %v715
        %v732 = vmul.f32 %v715, %v731
        %v733 = vsub.f32 1.0, %v732
        %v734 = vmul.f32 %v731, %v733
        %v735 = vadd.f32 %v731, %v734
        %vm736 = vweird.f32 %v715
        %vm737 = vweird.f32 %v731
        %vm738 = vmor %vm736, %vm737
        %v739 = vsel %vm738, %v731, %v735
        %v740 = vand.u32 2147483647, %v715
        %vm741 = vcmp.eq.f32.partialorder %v740, 8.507059e+37
        %v742 = vand.u32 %v715, 2147483648
        %v743 = vor.u32 1.1754944e-38, %v742
        %v744 = vsel %vm741, %v743, %v739
        %v745 = vmul.f32 1.0, %v744
        %v746 = vtanh.pop %v706
        %v747 = vtanh.pop %v707
        %v748 = vmul.f32 %v730, %v650
        %v749 = vmul.f32 %v745, %v651
        %752 = vrot.lane.b32.xlu0 %v746, 32
        %v753 = vpop.permute.xlu0 %752
        %754 = vrot.lane.b32.xlu0 %v747, 32
        %v755 = vpop.permute.xlu0 %754
        %v758 = vmul.f32 %v730, %v753
        %v759 = vmul.f32 %v745, %v755
        %762 = vrot.lane.b32.xlu0 %v758, 32
        %v763 = vpop.permute.xlu0 %762
        %764 = vrot.lane.b32.xlu0 %v759, 32
        %v765 = vpop.permute.xlu0 %764
        %v768 = vadd.f32 %v748, %v763
        %v769 = vadd.f32 %v749, %v765
        %v770 = vtanh.pop %v768
        %v771 = vtanh.pop %v769
        %774 = vrot.lane.b32.xlu0 %v770, 32
        %v775 = vpop.permute.xlu0 %774
        %776 = vrot.lane.b32.xlu0 %v771, 32
        %v777 = vpop.permute.xlu0 %776
        %v780 = vmul.f32 %v730, %v775
        %v781 = vmul.f32 %v745, %v777
        %784 = vrot.lane.b32.xlu0 %v780, 64
        %v785 = vpop.permute.xlu0 %784
        %786 = vrot.lane.b32.xlu0 %v781, 64
        %v787 = vpop.permute.xlu0 %786
        %790 = vst.msk [vmem:[%s180 + $0x4] sm:$0x1] %vm316, %v785
        %791 = vst.msk [vmem:[%s180 + $0xc] sm:$0x1] %vm316, %v787
        %v792 = vld [vmem:[%s162 + $0x5] sm:$0x1]
        %v793 = vld [vmem:[%s162 + $0xd] sm:$0x1]
        %v794 = vrot.slane %v781, 7
        %v795 = vsel %vm322, %v794, %v780
        %796 = vrot.lane.b32.xlu0 %v795, 64
        %v797 = vpop.permute.xlu0 %796
        %v798 = vsel %vm196, %v797, 0
        %800 = vmatpush.msra.mxu0 0.0
        %801 = vmatpush.msra.mxu0 0.0
        %802 = vmatpush.msra.mxu0 0.0
        %803 = vmatpush.msra.mxu0 0.0
        %804 = vmatpush.msra.mxu0 0.0
        %805 = vmatpush.msra.mxu0 0.0
        %806 = vmatpush.msra.mxu0 0.0
        %807 = vmatpush.msra.mxu0 0.0
        %808 = vmatpush.msra.mxu0 0.0
        %809 = vmatpush.msra.mxu0 0.0
        %810 = vmatpush.msra.mxu0 0.0
        %811 = vmatpush.msra.mxu0 0.0
        %812 = vmatpush.msra.mxu0 %v191
        %813 = vmatpush.msra.mxu0 %v190
        %814 = vmatpush.msra.mxu0 %v189
        %815 = vmatpush.msra.mxu0 %v188
        %816 = vmatmul.f32.gmra.mxu0 %v798
        %v817 = vpop.f32.mrf.mxu0
        %v818 = vadd.f32 0.0, %v817
        %819 = vdwg.mxu0
        %v821 = vrot.slane %v818, 1
        %v824 = vadd.f32 %v792, %v818
        %v825 = vadd.f32 %v793, %v821
        %v826 = vxor.u32 %v824, 2147483648
        %v827 = vxor.u32 %v825, 2147483648
        %v828 = vmul.f32 %v826, 1.442695
        %v829 = vpow.pop %v828
        %v830 = vmul.f32 %v827, 1.442695
        %v831 = vpow.pop %v830
        %v832 = vadd.f32 %v829, 1.0
        %v833 = vadd.f32 %v831, 1.0
        %v834 = vrcp.pop %v832
        %v835 = vmul.f32 %v832, %v834
        %v836 = vsub.f32 1.0, %v835
        %v837 = vmul.f32 %v834, %v836
        %v838 = vadd.f32 %v834, %v837
        %vm839 = vweird.f32 %v832
        %vm840 = vweird.f32 %v834
        %vm841 = vmor %vm839, %vm840
        %v842 = vsel %vm841, %v834, %v838
        %v843 = vand.u32 2147483647, %v832
        %vm844 = vcmp.eq.f32.partialorder %v843, 8.507059e+37
        %v845 = vand.u32 %v832, 2147483648
        %v846 = vor.u32 1.1754944e-38, %v845
        %v847 = vsel %vm844, %v846, %v842
        %v848 = vmul.f32 1.0, %v847
        %v849 = vrcp.pop %v833
        %v850 = vmul.f32 %v833, %v849
        %v851 = vsub.f32 1.0, %v850
        %v852 = vmul.f32 %v849, %v851
        %v853 = vadd.f32 %v849, %v852
        %vm854 = vweird.f32 %v833
        %vm855 = vweird.f32 %v849
        %vm856 = vmor %vm854, %vm855
        %v857 = vsel %vm856, %v849, %v853
        %v858 = vand.u32 2147483647, %v833
        %vm859 = vcmp.eq.f32.partialorder %v858, 8.507059e+37
        %v860 = vand.u32 %v833, 2147483648
        %v861 = vor.u32 1.1754944e-38, %v860
        %v862 = vsel %vm859, %v861, %v857
        %v863 = vmul.f32 1.0, %v862
        %v864 = vtanh.pop %v824
        %v865 = vtanh.pop %v825
        %v866 = vmul.f32 %v848, %v768
        %v867 = vmul.f32 %v863, %v769
        %870 = vrot.lane.b32.xlu0 %v864, 32
        %v871 = vpop.permute.xlu0 %870
        %872 = vrot.lane.b32.xlu0 %v865, 32
        %v873 = vpop.permute.xlu0 %872
        %v876 = vmul.f32 %v848, %v871
        %v877 = vmul.f32 %v863, %v873
        %880 = vrot.lane.b32.xlu0 %v876, 32
        %v881 = vpop.permute.xlu0 %880
        %882 = vrot.lane.b32.xlu0 %v877, 32
        %v883 = vpop.permute.xlu0 %882
        %v886 = vadd.f32 %v866, %v881
        %v887 = vadd.f32 %v867, %v883
        %v888 = vtanh.pop %v886
        %v889 = vtanh.pop %v887
        %892 = vrot.lane.b32.xlu0 %v888, 32
        %v893 = vpop.permute.xlu0 %892
        %894 = vrot.lane.b32.xlu0 %v889, 32
        %v895 = vpop.permute.xlu0 %894
        %v898 = vmul.f32 %v848, %v893
        %v899 = vmul.f32 %v863, %v895
        %902 = vrot.lane.b32.xlu0 %v898, 64
        %v903 = vpop.permute.xlu0 %902
        %904 = vrot.lane.b32.xlu0 %v899, 64
        %v905 = vpop.permute.xlu0 %904
        %908 = vst.msk [vmem:[%s180 + $0x5] sm:$0x1] %vm316, %v903
        %909 = vst.msk [vmem:[%s180 + $0xd] sm:$0x1] %vm316, %v905
        %v910 = vld [vmem:[%s162 + $0x6] sm:$0x1]
        %v911 = vld [vmem:[%s162 + $0xe] sm:$0x1]
        %v912 = vrot.slane %v899, 7
        %v913 = vsel %vm322, %v912, %v898
        %914 = vrot.lane.b32.xlu0 %v913, 64
        %v915 = vpop.permute.xlu0 %914
        %v916 = vsel %vm196, %v915, 0
        %918 = vmatpush.msra.mxu0 0.0
        %919 = vmatpush.msra.mxu0 0.0
        %920 = vmatpush.msra.mxu0 0.0
        %921 = vmatpush.msra.mxu0 0.0
        %922 = vmatpush.msra.mxu0 0.0
        %923 = vmatpush.msra.mxu0 0.0
        %924 = vmatpush.msra.mxu0 0.0
        %925 = vmatpush.msra.mxu0 0.0
        %926 = vmatpush.msra.mxu0 0.0
        %927 = vmatpush.msra.mxu0 0.0
        %928 = vmatpush.msra.mxu0 0.0
        %929 = vmatpush.msra.mxu0 0.0
        %930 = vmatpush.msra.mxu0 %v191
        %931 = vmatpush.msra.mxu0 %v190
        %932 = vmatpush.msra.mxu0 %v189
        %933 = vmatpush.msra.mxu0 %v188
        %934 = vmatmul.f32.gmra.mxu0 %v916
        %v935 = vpop.f32.mrf.mxu0
        %v936 = vadd.f32 0.0, %v935
        %937 = vdwg.mxu0
        %v939 = vrot.slane %v936, 1
        %v942 = vadd.f32 %v910, %v936
        %v943 = vadd.f32 %v911, %v939
        %v944 = vxor.u32 %v942, 2147483648
        %v945 = vxor.u32 %v943, 2147483648
        %v946 = vmul.f32 %v944, 1.442695
        %v947 = vpow.pop %v946
        %v948 = vmul.f32 %v945, 1.442695
        %v949 = vpow.pop %v948
        %v950 = vadd.f32 %v947, 1.0
        %v951 = vadd.f32 %v949, 1.0
        %v952 = vrcp.pop %v950
        %v953 = vmul.f32 %v950, %v952
        %v954 = vsub.f32 1.0, %v953
        %v955 = vmul.f32 %v952, %v954
        %v956 = vadd.f32 %v952, %v955
        %vm957 = vweird.f32 %v950
        %vm958 = vweird.f32 %v952
        %vm959 = vmor %vm957, %vm958
        %v960 = vsel %vm959, %v952, %v956
        %v961 = vand.u32 2147483647, %v950
        %vm962 = vcmp.eq.f32.partialorder %v961, 8.507059e+37
        %v963 = vand.u32 %v950, 2147483648
        %v964 = vor.u32 1.1754944e-38, %v963
        %v965 = vsel %vm962, %v964, %v960
        %v966 = vmul.f32 1.0, %v965
        %v967 = vrcp.pop %v951
        %v968 = vmul.f32 %v951, %v967
        %v969 = vsub.f32 1.0, %v968
        %v970 = vmul.f32 %v967, %v969
        %v971 = vadd.f32 %v967, %v970
        %vm972 = vweird.f32 %v951
        %vm973 = vweird.f32 %v967
        %vm974 = vmor %vm972, %vm973
        %v975 = vsel %vm974, %v967, %v971
        %v976 = vand.u32 2147483647, %v951
        %vm977 = vcmp.eq.f32.partialorder %v976, 8.507059e+37
        %v978 = vand.u32 %v951, 2147483648
        %v979 = vor.u32 1.1754944e-38, %v978
        %v980 = vsel %vm977, %v979, %v975
        %v981 = vmul.f32 1.0, %v980
        %v982 = vtanh.pop %v942
        %v983 = vtanh.pop %v943
        %v984 = vmul.f32 %v966, %v886
        %v985 = vmul.f32 %v981, %v887
        %988 = vrot.lane.b32.xlu0 %v982, 32
        %v989 = vpop.permute.xlu0 %988
        %990 = vrot.lane.b32.xlu0 %v983, 32
        %v991 = vpop.permute.xlu0 %990
        %v994 = vmul.f32 %v966, %v989
        %v995 = vmul.f32 %v981, %v991
        %998 = vrot.lane.b32.xlu0 %v994, 32
        %v999 = vpop.permute.xlu0 %998
        %1000 = vrot.lane.b32.xlu0 %v995, 32
        %v1001 = vpop.permute.xlu0 %1000
        %v1004 = vadd.f32 %v984, %v999
        %v1005 = vadd.f32 %v985, %v1001
        %v1006 = vtanh.pop %v1004
        %v1007 = vtanh.pop %v1005
        %1010 = vrot.lane.b32.xlu0 %v1006, 32
        %v1011 = vpop.permute.xlu0 %1010
        %1012 = vrot.lane.b32.xlu0 %v1007, 32
        %v1013 = vpop.permute.xlu0 %1012
        %v1016 = vmul.f32 %v966, %v1011
        %v1017 = vmul.f32 %v981, %v1013
        %1020 = vrot.lane.b32.xlu0 %v1016, 64
        %v1021 = vpop.permute.xlu0 %1020
        %1022 = vrot.lane.b32.xlu0 %v1017, 64
        %v1023 = vpop.permute.xlu0 %1022
        %1026 = vst.msk [vmem:[%s180 + $0x6] sm:$0x1] %vm316, %v1021
        %1027 = vst.msk [vmem:[%s180 + $0xe] sm:$0x1] %vm316, %v1023
        %v1028 = vld [vmem:[%s162 + $0x7] sm:$0x1]
        %v1029 = vld [vmem:[%s162 + $0xf] sm:$0x1]
        %v1030 = vrot.slane %v1017, 7
        %v1031 = vsel %vm322, %v1030, %v1016
        %1032 = vrot.lane.b32.xlu0 %v1031, 64
        %v1033 = vpop.permute.xlu0 %1032
        %v1034 = vsel %vm196, %v1033, 0
        %1036 = vmatpush.msra.mxu0 0.0
        %1037 = vmatpush.msra.mxu0 0.0
        %1038 = vmatpush.msra.mxu0 0.0
        %1039 = vmatpush.msra.mxu0 0.0
        %1040 = vmatpush.msra.mxu0 0.0
        %1041 = vmatpush.msra.mxu0 0.0
        %1042 = vmatpush.msra.mxu0 0.0
        %1043 = vmatpush.msra.mxu0 0.0
        %1044 = vmatpush.msra.mxu0 0.0
        %1045 = vmatpush.msra.mxu0 0.0
        %1046 = vmatpush.msra.mxu0 0.0
        %1047 = vmatpush.msra.mxu0 0.0
        %1048 = vmatpush.msra.mxu0 %v191
        %1049 = vmatpush.msra.mxu0 %v190
        %1050 = vmatpush.msra.mxu0 %v189
        %1051 = vmatpush.msra.mxu0 %v188
        %1052 = vmatmul.f32.gmra.mxu0 %v1034
        %v1053 = vpop.f32.mrf.mxu0
        %v1054 = vadd.f32 0.0, %v1053
        %1055 = vdwg.mxu0
        %v1057 = vrot.slane %v1054, 1
        %v1060 = vadd.f32 %v1028, %v1054
        %v1061 = vadd.f32 %v1029, %v1057
        %v1062 = vxor.u32 %v1060, 2147483648
        %v1063 = vxor.u32 %v1061, 2147483648
        %v1064 = vmul.f32 %v1062, 1.442695
        %v1065 = vpow.pop %v1064
        %v1066 = vmul.f32 %v1063, 1.442695
        %v1067 = vpow.pop %v1066
        %v1068 = vadd.f32 %v1065, 1.0
        %v1069 = vadd.f32 %v1067, 1.0
        %v1070 = vrcp.pop %v1068
        %v1071 = vmul.f32 %v1068, %v1070
        %v1072 = vsub.f32 1.0, %v1071
        %v1073 = vmul.f32 %v1070, %v1072
        %v1074 = vadd.f32 %v1070, %v1073
        %vm1075 = vweird.f32 %v1068
        %vm1076 = vweird.f32 %v1070
        %vm1077 = vmor %vm1075, %vm1076
        %v1078 = vsel %vm1077, %v1070, %v1074
        %v1079 = vand.u32 2147483647, %v1068
        %vm1080 = vcmp.eq.f32.partialorder %v1079, 8.507059e+37
        %v1081 = vand.u32 %v1068, 2147483648
        %v1082 = vor.u32 1.1754944e-38, %v1081
        %v1083 = vsel %vm1080, %v1082, %v1078
        %v1084 = vmul.f32 1.0, %v1083
        %v1085 = vrcp.pop %v1069
        %v1086 = vmul.f32 %v1069, %v1085
        %v1087 = vsub.f32 1.0, %v1086
        %v1088 = vmul.f32 %v1085, %v1087
        %v1089 = vadd.f32 %v1085, %v1088
        %vm1090 = vweird.f32 %v1069
        %vm1091 = vweird.f32 %v1085
        %vm1092 = vmor %vm1090, %vm1091
        %v1093 = vsel %vm1092, %v1085, %v1089
        %v1094 = vand.u32 2147483647, %v1069
        %vm1095 = vcmp.eq.f32.partialorder %v1094, 8.507059e+37
        %v1096 = vand.u32 %v1069, 2147483648
        %v1097 = vor.u32 1.1754944e-38, %v1096
        %v1098 = vsel %vm1095, %v1097, %v1093
        %v1099 = vmul.f32 1.0, %v1098
        %v1100 = vtanh.pop %v1060
        %v1101 = vtanh.pop %v1061
        %v1102 = vmul.f32 %v1084, %v1004
        %v1103 = vmul.f32 %v1099, %v1005
        %1106 = vrot.lane.b32.xlu0 %v1100, 32
        %v1107 = vpop.permute.xlu0 %1106
        %1108 = vrot.lane.b32.xlu0 %v1101, 32
        %v1109 = vpop.permute.xlu0 %1108
        %v1112 = vmul.f32 %v1084, %v1107
        %v1113 = vmul.f32 %v1099, %v1109
        %1116 = vrot.lane.b32.xlu0 %v1112, 32
        %v1117 = vpop.permute.xlu0 %1116
        %1118 = vrot.lane.b32.xlu0 %v1113, 32
        %v1119 = vpop.permute.xlu0 %1118
        %v1122 = vadd.f32 %v1102, %v1117
        %v1123 = vadd.f32 %v1103, %v1119
        %v1124 = vtanh.pop %v1122
        %v1125 = vtanh.pop %v1123
        %1128 = vrot.lane.b32.xlu0 %v1124, 32
        %v1129 = vpop.permute.xlu0 %1128
        %1130 = vrot.lane.b32.xlu0 %v1125, 32
        %v1131 = vpop.permute.xlu0 %1130
        %v1134 = vmul.f32 %v1084, %v1129
        %v1135 = vmul.f32 %v1099, %v1131
        %1138 = vrot.lane.b32.xlu0 %v1134, 64
        %v1139 = vpop.permute.xlu0 %1138
        %1140 = vrot.lane.b32.xlu0 %v1135, 64
        %v1141 = vpop.permute.xlu0 %1140
        %1144 = vst.msk [vmem:[%s180 + $0x7] sm:$0x1] %vm316, %v1139
        %1145 = vst.msk [vmem:[%s180 + $0xf] sm:$0x1] %vm316, %v1141
        %v1146 = vrot.slane %v1135, 7
        %v1147 = vsel %vm322, %v1146, %v1134
        %1148 = vrot.lane.b32.xlu0 %v1147, 64
        %v1149 = vpop.permute.xlu0 %1148
        %vm1151 = vcmask 254976
        %1152 = vst.msk [vmem:[#allocation2] sm:$0x3] %vm1151, %v1149
        %v1155 = vrot.slane %v1123, 7
        %v1156 = vsel %vm322, %v1155, %v1122
        %1157 = vrot.lane.b32.xlu0 %v1156, 96
        %v1158 = vpop.permute.xlu0 %1157
        %1160 = vst.msk [vmem:[#allocation3] sm:$0x3] %vm1151, %v1158
        %s1161 = sand.u32 %s71, 1
        %s1162 = scalar_lea.sflag [#allocation6], %s1161
        %s1163 = sand.u32 %s71, 1
        %s1164 = smul.addr %s1163, 16
        %s1165 = scalar_lea.vmem [#allocation5], %s1164
        // Predicated region
        $region71: #{decoder_forward.1} parent=61 // pred_check
          %p1166 = pneg %p81
        $region72: #{decoder_forward.1} parent=61 // pred_check_branch
          %1168 = sbr.rel (%p1166) target = $region74
        $region73: #{decoder_forward.1} parent=61 // pred_region
          %1170 = vsyncadd %s1162, 0
          %s1171 = smul.addr %s16, 8
          %s1172 = scalar_lea.hbm %s2, %s1171
          %s1173 = sshll.u32 %s1165, 4
          %s1174 = int_to_ptr.vmem [resolvable:$true] %s1173
          %s1175 = sshll.u32 %s1172, 4
          %s1176 = int_to_ptr.hbm [resolvable:$true] %s1175
          %1181 = dma.vmem_to_hbm [thread:$0]  %s1174, 256, %s1176, %s1162, 128, 256, 8
        $region74: #{decoder_forward.1} parent=61 // pred_fallthru
          _
      $region62: #{decoder_forward.1} parent=5 // pred_fallthru
        _
      %p1182 = scmp.le.s32.totalorder 2, %s11
      // Predicated region
      $region75: #{decoder_forward.1} parent=5 // pred_check
        %p1183 = pneg %p1182
      $region76: #{decoder_forward.1} parent=5 // pred_check_branch
        %1185 = sbr.rel (%p1183) target = $region78
      $region77: #{decoder_forward.1} parent=5 // pred_region
        %s1186 = ssub.s32 %s11, 2
        // Predicated region
        $region79: #{decoder_forward.1} parent=77 // pred_check
          %p1187 = pneg %p87
        $region80: #{decoder_forward.1} parent=77 // pred_check_branch
          %1189 = sbr.rel (%p1187) target = $region82
        $region81: #{decoder_forward.1} parent=77 // pred_region
          %s1190 = sand.u32 %s72, 1
          %s1191 = scalar_lea.sflag [#allocation6], %s1190
          %s1192 = sand.u32 %s72, 1
          %s1193 = smul.addr %s1192, 16
          %s1194 = scalar_lea.vmem [#allocation5], %s1193
          %1196 = dma.done %s1191, 256
        $region82: #{decoder_forward.1} parent=77 // pred_fallthru
          _
      $region78: #{decoder_forward.1} parent=5 // pred_fallthru
        _
    $region6: #{decoder_forward.1} parent=1 // loop_footer
      %s15 = sadd.s32 1, %s11
    $region7: #{decoder_forward.1} parent=1 // loop_footer_branch
      %10 = sbr.rel target = $region3
    $region8: #{decoder_forward.1} parent=1 // loop_exit
      _
    %1197 = vsyncpa [#allocation6], 1
    %s1198 = scalar_lea.sflag [#allocation6], 1
    %1199 = vsyncpa %s1198, 1

</llo_original>
